<compile_context>
chip_gen: v6e
topology: v6e:2x2x1
jax: 0.10.0
libtpu: 0.0.40
codegen_flags: <defaults>
</compile_context>

<pallas_src>
import numpy as np
import jax
import jax.numpy as jnp
from jax.experimental import pallas as pl
from jax.experimental.pallas import tpu as pltpu


def _make_smoothness_kernel(Cd, Ci):
    inv_ci = 1.0 / float(Ci)

    def kernel(depth_ref, image_ref, out_ref):
        # depth_ref: (block_b, Cd, H, W) f32 in VMEM
        # image_ref: (block_b, Ci, H, W) f32 in VMEM
        # out_ref:   (1, 2)              f32 in SMEM -> (sum_x, sum_y)

        # Grayscale (channel mean) fused in-kernel: no extra HBM pass.
        if Ci > 1:
            g = jnp.sum(image_ref[...], axis=1) * inv_ci   # (bb, H, W)
        else:
            g = image_ref[:, 0]                            # (bb, H, W)

        # Edge-aware weights from image gradients, shared by all depth
        # channels.  exp() goes to the EUP slot.
        w_x = jnp.exp(-10.0 * jnp.abs(g[:, :, :-1] - g[:, :, 1:]))   # (bb, H, W-1)
        w_y = jnp.exp(-10.0 * jnp.abs(g[:, :-1, :] - g[:, 1:, :]))   # (bb, H-1, W)

        d = depth_ref[...]                                           # (bb, Cd, H, W)
        # Sum |gradient| over depth channels first: the weights are
        # channel-independent, so this needs only one multiply with w_x/w_y.
        d_dx = jnp.abs(d[:, :, :, :-1] - d[:, :, :, 1:])             # (bb, Cd, H, W-1)
        d_dy = jnp.abs(d[:, :, :-1, :] - d[:, :, 1:, :])             # (bb, Cd, H-1, W)
        if Cd > 1:
            d_dx = jnp.sum(d_dx, axis=1)                             # (bb, H, W-1)
            d_dy = jnp.sum(d_dy, axis=1)                             # (bb, H-1, W)
        else:
            d_dx = d_dx[:, 0]
            d_dy = d_dy[:, 0]

        out_ref[0, 0] = jnp.sum(d_dx * w_x)
        out_ref[0, 1] = jnp.sum(d_dy * w_y)

    return kernel


def smoothness_loss(depth, image, weight=0.1, block_b=None):
    """depth: (B, Cd, H, W), image: (B, Ci, H, W). Returns the scalar loss."""
    B, Cd, H, W = depth.shape
    Bi, Ci, Hi, Wi = image.shape
    assert Bi == B and Hi == H and Wi == W, "depth/image spatial shapes must match"
    assert H >= 2 and W >= 2

    depth = depth.astype(jnp.float32)
    image = image.astype(jnp.float32)

    if block_b is None:
        # As many batch elements per grid step as comfortably fit in VMEM
        # (inputs are double-buffered and a handful of image-sized f32
        # temporaries stay live).  Budget ~4 MiB of inputs per step.
        per_b_bytes = (Cd + Ci) * H * W * 4
        block_b = max(1, min(B, (4 << 20) // max(per_b_bytes, 1)))
    while B % block_b:
        block_b -= 1
    num_blocks = B // block_b

    kernel = _make_smoothness_kernel(Cd, Ci)

    partial = pl.pallas_call(
        kernel,
        out_shape=jax.ShapeDtypeStruct((num_blocks, 2), jnp.float32),
        grid_spec=pltpu.PrefetchScalarGridSpec(
            num_scalar_prefetch=0,
            grid=(num_blocks,),
            in_specs=[
                pl.BlockSpec((block_b, Cd, H, W), lambda b: (b, 0, 0, 0)),
                pl.BlockSpec((block_b, Ci, H, W), lambda b: (b, 0, 0, 0)),
            ],
            out_specs=pl.BlockSpec((1, 2), lambda b: (b, 0),
                                   memory_space=pltpu.SMEM),
        ),
        compiler_params=pltpu.CompilerParams(
            dimension_semantics=("parallel",)),   # distinct output block per step
    )(depth, image)

    sum_x = jnp.sum(partial[:, 0])
    sum_y = jnp.sum(partial[:, 1])
    n_x = B * Cd * H * (W - 1)
    n_y = B * Cd * (H - 1) * W
    return (sum_x / n_x + sum_y / n_y) * weight


def _smoothness_loss_ref(depth, image, weight=0.1):
    """Plain-JAX reference mirroring the PyTorch module."""
    if image.shape[1] > 1:
        g = jnp.mean(image, axis=1, keepdims=True)
    else:
        g = image
    d_dx = jnp.abs(depth[:, :, :, :-1] - depth[:, :, :, 1:])
    d_dy = jnp.abs(depth[:, :, :-1, :] - depth[:, :, 1:, :])
    g_dx = jnp.abs(g[:, :, :, :-1] - g[:, :, :, 1:])
    g_dy = jnp.abs(g[:, :, :-1, :] - g[:, :, 1:, :])
    w_x = jnp.exp(-g_dx * 10.0)
    w_y = jnp.exp(-g_dy * 10.0)
    return (jnp.mean(d_dx * w_x) + jnp.mean(d_dy * w_y)) * weight


if __name__ == "__main__":
    key = jax.random.PRNGKey(0)
    k1, k2 = jax.random.split(key)
    # Depth map (single channel) and RGB image, NCHW.
    depth = jax.random.uniform(k1, (2, 1, 16, 16), dtype=jnp.float32)
    image = jax.random.uniform(k2, (2, 3, 16, 16), dtype=jnp.float32)

    out = jax.block_until_ready(smoothness_loss(depth, image, weight=0.1))
    ref = jax.block_until_ready(_smoothness_loss_ref(depth, image, 0.1))
    np.testing.assert_allclose(np.asarray(out), np.asarray(ref),
                               rtol=1e-4, atol=1e-6)

    print("KERNEL_OK")
</pallas_src>

<mosaic_0001>
module attributes {stable_mosaic.version = 11 : i64} {
  func.func @kernel(%arg0: i32, %arg1: memref<2x1x16x16xf32, #tpu.memory_space<vmem>>, %arg2: memref<2x3x16x16xf32, #tpu.memory_space<vmem>>, %arg3: memref<1x2xf32, #tpu.memory_space<smem>>) attributes {dimension_semantics = [#tpu.dimension_semantics<parallel>], iteration_bounds = array<i64: 1>, scalar_prefetch = 0 : i64, scratch_operands = 0 : i64, tpu.core_type = #tpu.core_type<tc>, window_params = [{transform_indices = @transform_0, window_bounds = array<i64: 2, 1, 16, 16>}, {transform_indices = @transform_1, window_bounds = array<i64: 2, 3, 16, 16>}, {transform_indices = @transform_2, window_bounds = array<i64: 1, 2>}]} {
    %c0 = arith.constant 0 : index
    %c0_0 = arith.constant 0 : index
    %c0_1 = arith.constant 0 : index
    %c0_2 = arith.constant 0 : index
    %0 = vector.load %arg2[%c0, %c0_0, %c0_1, %c0_2] : memref<2x3x16x16xf32, #tpu.memory_space<vmem>>, vector<2x3x16x16xf32>
    %cst = arith.constant dense<0.000000e+00> : vector<2x16x16xf32>
    %1 = vector.multi_reduction <add>, %0, %cst [1] : vector<2x3x16x16xf32> to vector<2x16x16xf32>
    %cst_3 = arith.constant 0.333333343 : f32
    %2 = vector.broadcast %cst_3 : f32 to vector<2x16x16xf32>
    %3 = arith.mulf %1, %2 : vector<2x16x16xf32>
    %4 = vector.extract_strided_slice %3 {offsets = [0, 0, 0], sizes = [2, 16, 15], strides = [1, 1, 1]} : vector<2x16x16xf32> to vector<2x16x15xf32>
    %5 = vector.extract_strided_slice %3 {offsets = [0, 0, 1], sizes = [2, 16, 15], strides = [1, 1, 1]} : vector<2x16x16xf32> to vector<2x16x15xf32>
    %6 = arith.subf %4, %5 : vector<2x16x15xf32>
    %7 = math.absf %6 : vector<2x16x15xf32>
    %cst_4 = arith.constant -1.000000e+01 : f32
    %8 = vector.broadcast %cst_4 : f32 to vector<2x16x15xf32>
    %9 = arith.mulf %8, %7 : vector<2x16x15xf32>
    %10 = math.exp %9 : vector<2x16x15xf32>
    %11 = vector.extract_strided_slice %3 {offsets = [0, 0, 0], sizes = [2, 15, 16], strides = [1, 1, 1]} : vector<2x16x16xf32> to vector<2x15x16xf32>
    %12 = vector.extract_strided_slice %3 {offsets = [0, 1, 0], sizes = [2, 15, 16], strides = [1, 1, 1]} : vector<2x16x16xf32> to vector<2x15x16xf32>
    %13 = arith.subf %11, %12 : vector<2x15x16xf32>
    %14 = math.absf %13 : vector<2x15x16xf32>
    %cst_5 = arith.constant -1.000000e+01 : f32
    %15 = vector.broadcast %cst_5 : f32 to vector<2x15x16xf32>
    %16 = arith.mulf %15, %14 : vector<2x15x16xf32>
    %17 = math.exp %16 : vector<2x15x16xf32>
    %c0_6 = arith.constant 0 : index
    %c0_7 = arith.constant 0 : index
    %c0_8 = arith.constant 0 : index
    %c0_9 = arith.constant 0 : index
    %18 = vector.load %arg1[%c0_6, %c0_7, %c0_8, %c0_9] : memref<2x1x16x16xf32, #tpu.memory_space<vmem>>, vector<2x1x16x16xf32>
    %19 = vector.extract_strided_slice %18 {offsets = [0, 0, 0, 0], sizes = [2, 1, 16, 15], strides = [1, 1, 1, 1]} : vector<2x1x16x16xf32> to vector<2x1x16x15xf32>
    %20 = vector.extract_strided_slice %18 {offsets = [0, 0, 0, 1], sizes = [2, 1, 16, 15], strides = [1, 1, 1, 1]} : vector<2x1x16x16xf32> to vector<2x1x16x15xf32>
    %21 = arith.subf %19, %20 : vector<2x1x16x15xf32>
    %22 = math.absf %21 : vector<2x1x16x15xf32>
    %23 = vector.extract_strided_slice %18 {offsets = [0, 0, 0, 0], sizes = [2, 1, 15, 16], strides = [1, 1, 1, 1]} : vector<2x1x16x16xf32> to vector<2x1x15x16xf32>
    %24 = vector.extract_strided_slice %18 {offsets = [0, 0, 1, 0], sizes = [2, 1, 15, 16], strides = [1, 1, 1, 1]} : vector<2x1x16x16xf32> to vector<2x1x15x16xf32>
    %25 = arith.subf %23, %24 : vector<2x1x15x16xf32>
    %26 = math.absf %25 : vector<2x1x15x16xf32>
    %27 = vector.shape_cast %22 : vector<2x1x16x15xf32> to vector<2x16x15xf32>
    %28 = vector.shape_cast %26 : vector<2x1x15x16xf32> to vector<2x15x16xf32>
    %29 = arith.mulf %27, %10 : vector<2x16x15xf32>
    %30 = vector.shape_cast %29 : vector<2x16x15xf32> to vector<1x2x16x15xf32>
    %cst_10 = arith.constant dense<0.000000e+00> : vector<1xf32>
    %31 = vector.multi_reduction <add>, %30, %cst_10 [1, 2, 3] : vector<1x2x16x15xf32> to vector<1xf32>
    %32 = vector.shape_cast %31 : vector<1xf32> to vector<1x1x1x1xf32>
    %33 = vector.extract %32[0, 0, 0, 0] : f32 from vector<1x1x1x1xf32>
    %c0_11 = arith.constant 0 : index
    %c0_12 = arith.constant 0 : index
    %34 = memref.load %arg3[%c0_11, %c0_12] : memref<1x2xf32, #tpu.memory_space<smem>>
    memref.store %33, %arg3[%c0_11, %c0_12] : memref<1x2xf32, #tpu.memory_space<smem>>
    %35 = arith.mulf %28, %17 : vector<2x15x16xf32>
    %36 = vector.shape_cast %35 : vector<2x15x16xf32> to vector<1x2x15x16xf32>
    %cst_13 = arith.constant dense<0.000000e+00> : vector<1xf32>
    %37 = vector.multi_reduction <add>, %36, %cst_13 [1, 2, 3] : vector<1x2x15x16xf32> to vector<1xf32>
    %38 = vector.shape_cast %37 : vector<1xf32> to vector<1x1x1x1xf32>
    %39 = vector.extract %38[0, 0, 0, 0] : f32 from vector<1x1x1x1xf32>
    %c0_14 = arith.constant 0 : index
    %c1 = arith.constant 1 : index
    %40 = memref.load %arg3[%c0_14, %c1] : memref<1x2xf32, #tpu.memory_space<smem>>
    memref.store %39, %arg3[%c0_14, %c1] : memref<1x2xf32, #tpu.memory_space<smem>>
    return
  }
  func.func @transform_0(%arg0: i32) -> (i32, i32, i32, i32) {
    %c0_i32 = arith.constant 0 : i32
    %c0_i32_0 = arith.constant 0 : i32
    %c0_i32_1 = arith.constant 0 : i32
    %c0_i32_2 = arith.constant 0 : i32
    return %arg0, %c0_i32, %c0_i32_0, %c0_i32_1 : i32, i32, i32, i32
  }
  func.func @transform_1(%arg0: i32) -> (i32, i32, i32, i32) {
    %c0_i32 = arith.constant 0 : i32
    %c0_i32_0 = arith.constant 0 : i32
    %c0_i32_1 = arith.constant 0 : i32
    %c0_i32_2 = arith.constant 0 : i32
    return %arg0, %c0_i32, %c0_i32_0, %c0_i32_1 : i32, i32, i32, i32
  }
  func.func @transform_2(%arg0: i32) -> (i32, i32) {
    %c0_i32 = arith.constant 0 : i32
    %c0_i32_0 = arith.constant 0 : i32
    return %arg0, %c0_i32 : i32, i32
  }
}

</mosaic_0001>

<llo_original>
// kernel: tpu_custom_call.1
$region0: #{tpu_custom_call.1}
  #allocation0 [shape = 'u32[]', space=smem, size = 0x4, offset = 0x4, fixed_abs, tag = 'smem constant byte address 0x4 - core index']
  #allocation1 [shape = 'u32[144,128]{1,0:T(1,128)}', space=vmem, size = 0x12000, scoped, tag = 'internal scratch']
  %s0 = inlined_call_operand.hbm [shape: f32[2,1,16,16], index: 0, kind: input, shape index: {}]
  %s1 = inlined_call_operand.hbm [shape: f32[2,3,16,16], index: 1, kind: input, shape index: {}]
  %s2 = inlined_call_operand.hbm [shape: f32[1,2], index: 2, kind: output, shape index: {}]
  %s3 = sld [smem:[#allocation0]]
  $region26: #{tpu_custom_call.1} parent=0
    _
  %s5 = ssub.s32 1, %s3
  %s6 = scalar_select 0, %s5, %s3
  $region1: #{tpu_custom_call.1} parent=0
    #allocation2 [shape = 'u8[16384]{0}', space=vmem, size = 0x4000, scoped, tag = 'input window, operand 0, single buffered']
    #allocation3 [shape = 's32[1]{0}', space=sflag, size = 0x4, scoped, tag = 'scoped memory for tpu_custom_call.1']
    #allocation4 [shape = 's32[1]{0}', space=sflag, size = 0x4, scoped, tag = 'scoped memory for tpu_custom_call.1']
    #allocation5 [shape = 'u8[49152]{0}', space=vmem, size = 0xc000, scoped, tag = 'input window, operand 1, single buffered']
    #allocation6 [shape = 's32[1]{0}', space=sflag, size = 0x4, scoped, tag = 'scoped memory for tpu_custom_call.1']
    #allocation7 [shape = 'u8[512]{0}', space=smem, size = 0x200, scoped, tag = 'output window, operand 0, single buffered']
    %7 = vsyncpa [#allocation3], 0
    %8 = vsyncpa [#allocation6], 0
    %9 = vsyncpa [#allocation4], 0
    // Predicated region
    $region2: #{tpu_custom_call.1} parent=1 // pred_check
      _
    $region3: #{tpu_custom_call.1} parent=1 // pred_check_branch
      %11 = sbr.rel (0) target = $region5
    $region4: #{tpu_custom_call.1} parent=1 // pred_region
      %s13 = ssub.s32 512, 512
      %14 = vsyncadd [#allocation3], %s13
      %s15 = sshll.u32 [#allocation2], 4
      %s16 = int_to_ptr.vmem [resolvable:$true] %s15
      %21 = dma.hbm_to_vmem [thread:$0]  %s0, 512, %s16, [#allocation3], 128, 128, 8
    $region5: #{tpu_custom_call.1} parent=1 // pred_fallthru
      _
    // Predicated region
    $region6: #{tpu_custom_call.1} parent=1 // pred_check
      _
    $region7: #{tpu_custom_call.1} parent=1 // pred_check_branch
      %23 = sbr.rel (0) target = $region9
    $region8: #{tpu_custom_call.1} parent=1 // pred_region
      %s25 = ssub.s32 1536, 1536
      %26 = vsyncadd [#allocation6], %s25
      %s27 = sshll.u32 [#allocation5], 4
      %s28 = int_to_ptr.vmem [resolvable:$true] %s27
      %33 = dma.hbm_to_vmem [thread:$0]  %s1, 1536, %s28, [#allocation6], 128, 128, 8
    $region9: #{tpu_custom_call.1} parent=1 // pred_fallthru
      _
    // Predicated region
    $region10: #{tpu_custom_call.1} parent=1 // pred_check
      _
    $region11: #{tpu_custom_call.1} parent=1 // pred_check_branch
      %35 = sbr.rel (0) target = $region13
    $region12: #{tpu_custom_call.1} parent=1 // pred_region
      %36 = dma.done [#allocation3], 512
    $region13: #{tpu_custom_call.1} parent=1 // pred_fallthru
      _
    // Predicated region
    $region14: #{tpu_custom_call.1} parent=1 // pred_check
      _
    $region15: #{tpu_custom_call.1} parent=1 // pred_check_branch
      %38 = sbr.rel (0) target = $region17
    $region16: #{tpu_custom_call.1} parent=1 // pred_region
      %39 = dma.done [#allocation6], 1536
    $region17: #{tpu_custom_call.1} parent=1 // pred_fallthru
      _
    %v40 = vld [vmem:[#allocation5] sm:$0xff]
    %v41 = vld [vmem:[#allocation5 + $0x8] sm:$0xff]
    %v42 = vld [vmem:[#allocation5 + $0x10] sm:$0xff]
    %v43 = vld [vmem:[#allocation5 + $0x18] sm:$0xff]
    %v44 = vld [vmem:[#allocation5 + $0x20] sm:$0xff]
    %v45 = vld [vmem:[#allocation5 + $0x28] sm:$0xff]
    %v46 = vld [vmem:[#allocation5 + $0x30] sm:$0xff]
    %v47 = vld [vmem:[#allocation5 + $0x38] sm:$0xff]
    %v48 = vld [vmem:[#allocation5 + $0x40] sm:$0xff]
    %v49 = vld [vmem:[#allocation5 + $0x48] sm:$0xff]
    %v50 = vld [vmem:[#allocation5 + $0x50] sm:$0xff]
    %v51 = vld [vmem:[#allocation5 + $0x58] sm:$0xff]
    %vm52 = vcmask 130048
    %v53 = vsel %vm52, %v40, 0.0
    %v54 = vsel %vm52, %v42, 0.0
    %v55 = vadd.f32 %v53, %v54
    %v56 = vsel %vm52, %v44, 0.0
    %v57 = vadd.f32 %v55, %v56
    %v58 = vsel %vm52, %v41, 0.0
    %v59 = vsel %vm52, %v43, 0.0
    %v60 = vadd.f32 %v58, %v59
    %v61 = vsel %vm52, %v45, 0.0
    %v62 = vadd.f32 %v60, %v61
    %v63 = vsel %vm52, %v46, 0.0
    %v64 = vsel %vm52, %v48, 0.0
    %v65 = vadd.f32 %v63, %v64
    %v66 = vsel %vm52, %v50, 0.0
    %v67 = vadd.f32 %v65, %v66
    %v68 = vsel %vm52, %v47, 0.0
    %v69 = vsel %vm52, %v49, 0.0
    %v70 = vadd.f32 %v68, %v69
    %v71 = vsel %vm52, %v51, 0.0
    %v72 = vadd.f32 %v70, %v71
    %v73 = vmul.f32 %v57, 0.33333334
    %v74 = vmul.f32 %v62, 0.33333334
    %v75 = vmul.f32 %v67, 0.33333334
    %v76 = vmul.f32 %v72, 0.33333334
    %81 = vrot.lane.b32.xlu0 %v73, 127
    %v82 = vpop.permute.xlu0 %81
    %83 = vrot.lane.b32.xlu0 %v74, 127
    %v84 = vpop.permute.xlu0 %83
    %85 = vrot.lane.b32.xlu0 %v75, 127
    %v86 = vpop.permute.xlu0 %85
    %87 = vrot.lane.b32.xlu0 %v76, 127
    %v88 = vpop.permute.xlu0 %87
    %v93 = vsub.f32 %v73, %v82
    %v94 = vsub.f32 %v74, %v84
    %v95 = vsub.f32 %v75, %v86
    %v96 = vsub.f32 %v76, %v88
    %v97 = vand.u32 2147483647, %v93
    %v98 = vand.u32 2147483647, %v94
    %v99 = vand.u32 2147483647, %v95
    %v100 = vand.u32 2147483647, %v96
    %v101 = vmul.f32 %v97, -10.0
    %v102 = vmul.f32 %v98, -10.0
    %v103 = vmul.f32 %v99, -10.0
    %v104 = vmul.f32 %v100, -10.0
    %v105 = vmul.f32 %v101, 1.442695
    %v106 = vpow.pop %v105
    %v107 = vmul.f32 %v102, 1.442695
    %v108 = vpow.pop %v107
    %v109 = vmul.f32 %v103, 1.442695
    %v110 = vpow.pop %v109
    %v111 = vmul.f32 %v104, 1.442695
    %v112 = vpow.pop %v111
    %vm113 = vcmask 1046528
    %v114 = vrot.slane %v73, 1
    %v115 = vrot.slane %v74, 1
    %v116 = vsel %vm113, %v114, %v115
    %v117 = vrot.slane %v75, 1
    %v118 = vrot.slane %v76, 1
    %v119 = vsel %vm113, %v117, %v118
    %v124 = vsub.f32 %v73, %v116
    %v125 = vsub.f32 %v74, %v115
    %v126 = vsub.f32 %v75, %v119
    %v127 = vsub.f32 %v76, %v118
    %v128 = vand.u32 2147483647, %v124
    %v129 = vand.u32 2147483647, %v125
    %v130 = vand.u32 2147483647, %v126
    %v131 = vand.u32 2147483647, %v127
    %v132 = vmul.f32 %v128, -10.0
    %v133 = vmul.f32 %v129, -10.0
    %v134 = vmul.f32 %v130, -10.0
    %v135 = vmul.f32 %v131, -10.0
    %v136 = vmul.f32 %v132, 1.442695
    %v137 = vpow.pop %v136
    %v138 = vmul.f32 %v133, 1.442695
    %v139 = vpow.pop %v138
    %v140 = vmul.f32 %v134, 1.442695
    %v141 = vpow.pop %v140
    %v142 = vmul.f32 %v135, 1.442695
    %v143 = vpow.pop %v142
    %v144 = vld [vmem:[#allocation2] sm:$0xff]
    %v145 = vld [vmem:[#allocation2 + $0x8] sm:$0xff]
    %v146 = vld [vmem:[#allocation2 + $0x10] sm:$0xff]
    %v147 = vld [vmem:[#allocation2 + $0x18] sm:$0xff]
    %152 = vrot.lane.b32.xlu0 %v144, 127
    %v153 = vpop.permute.xlu0 %152
    %154 = vrot.lane.b32.xlu0 %v145, 127
    %v155 = vpop.permute.xlu0 %154
    %156 = vrot.lane.b32.xlu0 %v146, 127
    %v157 = vpop.permute.xlu0 %156
    %158 = vrot.lane.b32.xlu0 %v147, 127
    %v159 = vpop.permute.xlu0 %158
    %v164 = vsub.f32 %v144, %v153
    %v165 = vsub.f32 %v145, %v155
    %v166 = vsub.f32 %v146, %v157
    %v167 = vsub.f32 %v147, %v159
    %v168 = vand.u32 2147483647, %v164
    %v169 = vand.u32 2147483647, %v165
    %v170 = vand.u32 2147483647, %v166
    %v171 = vand.u32 2147483647, %v167
    %v172 = vrot.slane %v144, 1
    %v173 = vrot.slane %v145, 1
    %v174 = vsel %vm113, %v172, %v173
    %v175 = vrot.slane %v146, 1
    %v176 = vrot.slane %v147, 1
    %v177 = vsel %vm113, %v175, %v176
    %v182 = vsub.f32 %v144, %v174
    %v183 = vsub.f32 %v145, %v173
    %v184 = vsub.f32 %v146, %v177
    %v185 = vsub.f32 %v147, %v176
    %v186 = vand.u32 2147483647, %v182
    %v187 = vand.u32 2147483647, %v183
    %v188 = vand.u32 2147483647, %v184
    %v189 = vand.u32 2147483647, %v185
    %v190 = vmul.f32 %v168, %v106
    %v191 = vmul.f32 %v169, %v108
    %v192 = vmul.f32 %v170, %v110
    %v193 = vmul.f32 %v171, %v112
    %vm194 = vcmask 121856
    %v195 = vsel %vm194, %v190, 0.0
    %v196 = vsel %vm194, %v191, 0.0
    %v197 = vadd.f32 %v195, %v196
    %v198 = vsel %vm194, %v192, 0.0
    %v199 = vadd.f32 %v197, %v198
    %v200 = vsel %vm194, %v193, 0.0
    %v201 = vadd.f32 %v199, %v200
    %202 = vadd.xlane.f32.xlu0 %v201
    %v203 = vpop.xlane.xlu0 %202
    %v204 = vrot.slane %v203, 4
    %v205 = vadd.f32 %v203, %v204
    %v206 = vrot.slane %v205, 2
    %v207 = vadd.f32 %v205, %v206
    %v208 = vrot.slane %v207, 1
    %v209 = vadd.f32 %v207, %v208
    %s210 = vtos %v209
    %s211 = scalar_lea.smem [#allocation7], 0
    %212 = sst [smem:[%s211]] %s210
    %v213 = vmul.f32 %v186, %v137
    %v214 = vmul.f32 %v187, %v139
    %v215 = vmul.f32 %v188, %v141
    %v216 = vmul.f32 %v189, %v143
    %v217 = vsel %vm52, %v213, 0.0
    %vm218 = vcmask 129024
    %v219 = vsel %vm218, %v214, 0.0
    %v220 = vadd.f32 %v217, %v219
    %v221 = vsel %vm52, %v215, 0.0
    %v222 = vadd.f32 %v220, %v221
    %v223 = vsel %vm218, %v216, 0.0
    %v224 = vadd.f32 %v222, %v223
    %225 = vadd.xlane.f32.xlu0 %v224
    %v226 = vpop.xlane.xlu0 %225
    %v227 = vrot.slane %v226, 4
    %v228 = vadd.f32 %v226, %v227
    %v229 = vrot.slane %v228, 2
    %v230 = vadd.f32 %v228, %v229
    %v231 = vrot.slane %v230, 1
    %v232 = vadd.f32 %v230, %v231
    %s233 = vtos %v232
    %s234 = scalar_lea.smem [#allocation7], 1
    %235 = sst [smem:[%s234]] %s233
    // Predicated region
    $region18: #{tpu_custom_call.1} parent=1 // pred_check
      _
    $region19: #{tpu_custom_call.1} parent=1 // pred_check_branch
      %237 = sbr.rel (0) target = $region21
    $region20: #{tpu_custom_call.1} parent=1 // pred_region
      %s239 = ssub.s32 16, 16
      %240 = vsyncadd [#allocation4], %s239
      %243 = dma.smem_to_hbm [#allocation7], 16, %s2, [#allocation4]
    $region21: #{tpu_custom_call.1} parent=1 // pred_fallthru
      _
    // Predicated region
    $region22: #{tpu_custom_call.1} parent=1 // pred_check
      _
    $region23: #{tpu_custom_call.1} parent=1 // pred_check_branch
      %245 = sbr.rel (0) target = $region25
    $region24: #{tpu_custom_call.1} parent=1 // pred_region
      %246 = dma.done [#allocation4], 16
    $region25: #{tpu_custom_call.1} parent=1 // pred_fallthru
      _
    %247 = sfence
    %248 = vsyncpa [#allocation3], 1
    %249 = vsyncpa [#allocation6], 1
    %250 = vsyncpa [#allocation4], 1

</llo_original>
